<compile_context>
chip_gen: v7x
topology: tpu7x:2x2x1
jax: 0.10.0
libtpu: 0.0.40
codegen_flags: <defaults>
</compile_context>

<pallas_src>
import functools

import jax
import jax.numpy as jnp
from jax.experimental import pallas as pl
from jax.experimental.pallas import tpu as pltpu


def _sumpool_flat_kernel(x_ref, o_ref, *, kh, kw, H, W):
    """Separable kh x kw sum-pool on flattened (rows, g*H*W) planes."""
    Lb = x_ref.shape[-1]          # lanes per row = g * H * W
    ph, pw = kh // 2, kw // 2

    # Cast exactly once; everything below stays in registers.
    x32 = x_ref[...].astype(jnp.float32)

    # Per-lane (h, w) coordinates inside each packed plane.  The mod/and by W
    # and H makes the edge masks also cover roll wrap-around and leakage
    # between packed planes.
    col = jax.lax.broadcasted_iota(jnp.int32, (1, Lb), 1)
    if (W & (W - 1)) == 0:                    # power of two: cheap bit ops
        w_idx = jnp.bitwise_and(col, W - 1)
        row = jax.lax.shift_right_logical(col, W.bit_length() - 1)
    else:
        w_idx = col % W
        row = col // W
    if (H & (H - 1)) == 0:
        h_idx = jnp.bitwise_and(row, H - 1)
    else:
        h_idx = row % H

    # ---- pass 1: kw shifts along W (lane axis), in registers via roll ----
    # roll(shift=-b) brings x[.., i + b] to lane i; lanes whose window column
    # (w + b) falls outside [0, W) are zeroed.
    s = x32
    for b in range(-pw, kw - pw):
        if b == 0:
            continue
        shifted = pltpu.roll(x32, shift=(-b) % Lb, axis=1)
        valid = (w_idx < W - b) if b > 0 else (w_idx >= -b)
        s = s + jnp.where(valid, shifted, 0.0)

    # ---- pass 2: kh shifts along H == whole-row (a*W lane) shifts ----
    out = s
    for a in range(-ph, kh - ph):
        if a == 0:
            continue
        shifted = pltpu.roll(s, shift=(-a * W) % Lb, axis=1)
        valid = (h_idx < H - a) if a > 0 else (h_idx >= -a)
        out = out + jnp.where(valid, shifted, 0.0)

    o_ref[...] = out.astype(o_ref.dtype)


def sum_pool_2d(x, kernel_size, *, block_rows=None):
    """x: (N, C, H, W). Sum pool over kh x kw windows, stride 1, pad k//2."""
    if isinstance(kernel_size, (tuple, list)):
        kh, kw = int(kernel_size[0]), int(kernel_size[1])
    else:
        kh = kw = int(kernel_size)
    if kh % 2 == 0 or kw % 2 == 0:
        # TODO(synk): even kernel sizes change the output spatial size to
        # (H+1, W+1); not supported by this flattened-plane fast path.
        raise NotImplementedError("sum_pool_2d supports odd kernel sizes only")

    N, C, H, W = x.shape
    NC, L = N * C, H * W
    itemsize = jnp.dtype(x.dtype).itemsize

    # Pack g planes per flattened row when a plane is narrower than a full
    # vreg lane width, so stores stay lane-dense (unmasked vst).
    g = 1
    if L < 128:
        want = pl.cdiv(128, L)
        for cand in range(want, NC + 1):
            if NC % cand == 0:
                g = cand
                break
    R, Lb = NC // g, g * L

    # (N, C, H, W) -> (R, Lb): row-major collapse, a free reshape.
    xf = x.reshape(R, Lb)

    # Sublane alignment for the input dtype (packed dtypes tile deeper).
    sub = {4: 8, 2: 16, 1: 32}.get(itemsize, 8)

    if block_rows is None:
        # ~2 MiB input block -> live VMEM (double-buffered in + out) stays a
        # few MiB, inside every generation's default scoped VMEM limit.
        budget_bytes = 2 << 20
        tc = max(sub, (budget_bytes // (Lb * itemsize)) // sub * sub)
        # Keep the single "parallel" grid axis >= MIN_BLOCKS long whenever
        # possible so v7x's second TensorCore gets work; this only costs a
        # tiny extra grid step on single-core v5e/v6e.
        MIN_BLOCKS = 4
        if R >= MIN_BLOCKS * sub:
            tc = min(tc, (R // MIN_BLOCKS) // sub * sub)
        if R <= tc or R < sub:
            tc = R                      # full axis is always a legal block
    else:
        tc = int(block_rows)
    grid = (pl.cdiv(R, tc),)

    kernel = functools.partial(_sumpool_flat_kernel, kh=kh, kw=kw, H=H, W=W)

    cost = pl.CostEstimate(
        flops=2 * (kh + kw - 2) * NC * L,
        transcendentals=0,
        bytes_accessed=2 * NC * L * itemsize,
    )

    out_flat = pl.pallas_call(
        kernel,
        out_shape=jax.ShapeDtypeStruct((R, Lb), x.dtype),
        grid_spec=pltpu.PrefetchScalarGridSpec(
            num_scalar_prefetch=0,
            grid=grid,
            in_specs=[pl.BlockSpec((tc, Lb), lambda i: (i, 0))],
            out_specs=pl.BlockSpec((tc, Lb), lambda i: (i, 0)),
        ),
        compiler_params=pltpu.CompilerParams(
            dimension_semantics=("parallel",),
            vmem_limit_bytes=32 * 1024 * 1024,
        ),
        cost_estimate=cost,
    )(xf)

    return out_flat.reshape(N, C, H, W)


def _reference_sum_pool(x, kernel_size):
    if isinstance(kernel_size, (tuple, list)):
        kh, kw = int(kernel_size[0]), int(kernel_size[1])
    else:
        kh = kw = int(kernel_size)
    ph, pw = kh // 2, kw // 2
    return jax.lax.reduce_window(
        x.astype(jnp.float32), 0.0, jax.lax.add,
        window_dimensions=(1, 1, kh, kw),
        window_strides=(1, 1, 1, 1),
        padding=((0, 0), (0, 0), (ph, ph), (pw, pw)),
    )


if __name__ == "__main__":
    key = jax.random.PRNGKey(0)
    k0, k1 = jax.random.split(key)

    # Primary check: shapes the module implies, f32, 3x3 window.
    N, C, H, W = 2, 4, 16, 16
    x = jax.random.normal(k0, (N, C, H, W), dtype=jnp.float32)
    out = jax.block_until_ready(sum_pool_2d(x, 3))
    ref = _reference_sum_pool(x, 3)
    assert out.shape == ref.shape, (out.shape, ref.shape)
    assert jnp.allclose(out, ref, atol=1e-5, rtol=1e-5), "f32 k=3 mismatch"

    # Larger window on the same input (longer roll chains in both passes).
    out5 = jax.block_until_ready(sum_pool_2d(x, 5))
    ref5 = _reference_sum_pool(x, 5)
    assert jnp.allclose(out5, ref5, atol=1e-4, rtol=1e-5), "f32 k=5 mismatch"

    # bf16 input with a partial edge block (R=24, block_rows=16 -> grid=2).
    xb = jax.random.normal(k1, (2, 12, 16, 16), dtype=jnp.bfloat16)
    outb = jax.block_until_ready(sum_pool_2d(xb, 3, block_rows=16))
    refb = _reference_sum_pool(xb, 3)
    assert jnp.allclose(outb.astype(jnp.float32), refb, atol=0.1, rtol=0.05), \
        "bf16 edge-block mismatch"

    print("KERNEL_OK")
</pallas_src>

<mosaic_0001>
module attributes {stable_mosaic.version = 11 : i64} {
  func.func @_sumpool_flat_kernel(%arg0: i32, %arg1: memref<8x256xf32, #tpu.memory_space<vmem>>, %arg2: memref<8x256xf32, #tpu.memory_space<vmem>>) attributes {dimension_semantics = [#tpu.dimension_semantics<parallel>], iteration_bounds = array<i64: 1>, scalar_prefetch = 0 : i64, scratch_operands = 0 : i64, tpu.core_type = #tpu.core_type<tc>, window_params = [{transform_indices = @transform_0, window_bounds = array<i64: 8, 256>}, {transform_indices = @transform_1, window_bounds = array<i64: 8, 256>}]} {
    %c0 = arith.constant 0 : index
    %c0_0 = arith.constant 0 : index
    %0 = vector.load %arg1[%c0, %c0_0] : memref<8x256xf32, #tpu.memory_space<vmem>>, vector<8x256xf32>
    %1 = tpu.iota {dimensions = array<i32: 1>} : vector<1x256xi32>
    %c15_i32 = arith.constant 15 : i32
    %2 = vector.broadcast %c15_i32 : i32 to vector<1x256xi32>
    %3 = arith.andi %1, %2 : vector<1x256xi32>
    %c4_i32 = arith.constant 4 : i32
    %4 = vector.broadcast %c4_i32 : i32 to vector<1x256xi32>
    %5 = arith.shrui %1, %4 : vector<1x256xi32>
    %c15_i32_1 = arith.constant 15 : i32
    %6 = vector.broadcast %c15_i32_1 : i32 to vector<1x256xi32>
    %7 = arith.andi %5, %6 : vector<1x256xi32>
    %c1_i32 = arith.constant 1 : i32
    %8 = tpu.dynamic_rotate %0 by %c1_i32 dim 1 : vector<8x256xf32>, i32 -> vector<8x256xf32>
    %c1_i32_2 = arith.constant 1 : i32
    %9 = vector.broadcast %c1_i32_2 : i32 to vector<1x256xi32>
    %10 = arith.cmpi sge, %3, %9 : vector<1x256xi32>
    %cst = arith.constant 0.000000e+00 : f32
    %11 = vector.shape_cast %10 : vector<1x256xi1> to vector<1x256xi1>
    %12 = vector.broadcast %11 : vector<1x256xi1> to vector<8x256xi1>
    %13 = vector.broadcast %cst : f32 to vector<8x256xf32>
    %14 = arith.select %12, %8, %13 : vector<8x256xi1>, vector<8x256xf32>
    %15 = arith.addf %0, %14 : vector<8x256xf32>
    %c255_i32 = arith.constant 255 : i32
    %16 = tpu.dynamic_rotate %0 by %c255_i32 dim 1 : vector<8x256xf32>, i32 -> vector<8x256xf32>
    %c15_i32_3 = arith.constant 15 : i32
    %17 = vector.broadcast %c15_i32_3 : i32 to vector<1x256xi32>
    %18 = arith.cmpi slt, %3, %17 : vector<1x256xi32>
    %cst_4 = arith.constant 0.000000e+00 : f32
    %19 = vector.shape_cast %18 : vector<1x256xi1> to vector<1x256xi1>
    %20 = vector.broadcast %19 : vector<1x256xi1> to vector<8x256xi1>
    %21 = vector.broadcast %cst_4 : f32 to vector<8x256xf32>
    %22 = arith.select %20, %16, %21 : vector<8x256xi1>, vector<8x256xf32>
    %23 = arith.addf %15, %22 : vector<8x256xf32>
    %c16_i32 = arith.constant 16 : i32
    %24 = tpu.dynamic_rotate %23 by %c16_i32 dim 1 : vector<8x256xf32>, i32 -> vector<8x256xf32>
    %c1_i32_5 = arith.constant 1 : i32
    %25 = vector.broadcast %c1_i32_5 : i32 to vector<1x256xi32>
    %26 = arith.cmpi sge, %7, %25 : vector<1x256xi32>
    %cst_6 = arith.constant 0.000000e+00 : f32
    %27 = vector.shape_cast %26 : vector<1x256xi1> to vector<1x256xi1>
    %28 = vector.broadcast %27 : vector<1x256xi1> to vector<8x256xi1>
    %29 = vector.broadcast %cst_6 : f32 to vector<8x256xf32>
    %30 = arith.select %28, %24, %29 : vector<8x256xi1>, vector<8x256xf32>
    %31 = arith.addf %23, %30 : vector<8x256xf32>
    %c240_i32 = arith.constant 240 : i32
    %32 = tpu.dynamic_rotate %23 by %c240_i32 dim 1 : vector<8x256xf32>, i32 -> vector<8x256xf32>
    %c15_i32_7 = arith.constant 15 : i32
    %33 = vector.broadcast %c15_i32_7 : i32 to vector<1x256xi32>
    %34 = arith.cmpi slt, %7, %33 : vector<1x256xi32>
    %cst_8 = arith.constant 0.000000e+00 : f32
    %35 = vector.shape_cast %34 : vector<1x256xi1> to vector<1x256xi1>
    %36 = vector.broadcast %35 : vector<1x256xi1> to vector<8x256xi1>
    %37 = vector.broadcast %cst_8 : f32 to vector<8x256xf32>
    %38 = arith.select %36, %32, %37 : vector<8x256xi1>, vector<8x256xf32>
    %39 = arith.addf %31, %38 : vector<8x256xf32>
    %c0_9 = arith.constant 0 : index
    %c0_10 = arith.constant 0 : index
    %40 = vector.load %arg2[%c0_9, %c0_10] : memref<8x256xf32, #tpu.memory_space<vmem>>, vector<8x256xf32>
    tpu.vector_store %arg2[%c0_9, %c0_10], %39 {strides = array<i32>} : memref<8x256xf32, #tpu.memory_space<vmem>>, vector<8x256xf32>,
    return
  }
  func.func @transform_0(%arg0: i32) -> (i32, i32) {
    %c0_i32 = arith.constant 0 : i32
    %c0_i32_0 = arith.constant 0 : i32
    return %arg0, %c0_i32 : i32, i32
  }
  func.func @transform_1(%arg0: i32) -> (i32, i32) {
    %c0_i32 = arith.constant 0 : i32
    %c0_i32_0 = arith.constant 0 : i32
    return %arg0, %c0_i32 : i32, i32
  }
}

</mosaic_0001>

<llo_original>
// kernel: tpu_custom_call.1
$region0: #{tpu_custom_call.1}
  #allocation0 [shape = 'u32[]', space=smem, size = 0x4, offset = 0x4, fixed_abs, tag = 'smem constant byte address 0x4 - core index']
  #allocation1 [shape = 'u32[144,128]{1,0:T(1,128)}', space=vmem, size = 0x12000, scoped, tag = 'internal scratch']
  %s0 = inlined_call_operand.hbm [shape: f32[8,256], index: 0, kind: input, shape index: {}]
  %s1 = inlined_call_operand.hbm [shape: f32[8,256], index: 1, kind: output, shape index: {}]
  %s2 = sld [smem:[#allocation0]]
  $region18: #{tpu_custom_call.1} parent=0
    _
  %s4 = ssub.s32 1, %s2
  %s5 = scalar_select 0, %s4, %s2
  $region1: #{tpu_custom_call.1} parent=0
    #allocation2 [shape = 'u8[8192]{0}', space=vmem, size = 0x2000, scoped, tag = 'input window, operand 0, single buffered']
    #allocation3 [shape = 's32[1]{0}', space=sflag, size = 0x4, scoped, tag = 'scoped memory for tpu_custom_call.1']
    #allocation4 [shape = 's32[1]{0}', space=sflag, size = 0x4, scoped, tag = 'scoped memory for tpu_custom_call.1']
    #allocation5 [shape = 'u8[8192]{0}', space=vmem, size = 0x2000, scoped, tag = 'output window, operand 0, single buffered']
    %6 = vsyncpa [#allocation3], 0
    %7 = vsyncpa [#allocation4], 0
    // Predicated region
    $region2: #{tpu_custom_call.1} parent=1 // pred_check
      _
    $region3: #{tpu_custom_call.1} parent=1 // pred_check_branch
      %9 = sbr.rel (0) target = $region5
    $region4: #{tpu_custom_call.1} parent=1 // pred_region
      %s11 = ssub.s32 256, 256
      %12 = vsyncadd [#allocation3], %s11
      %s14 = sshll.u32 [#allocation2], 4
      %s15 = int_to_ptr.vmem [resolvable:$true] %s14
      %17 = dma.hbm_to_vmem [thread:$0]  %s0, 256, %s15, [#allocation3]
    $region5: #{tpu_custom_call.1} parent=1 // pred_fallthru
      _
    // Predicated region
    $region6: #{tpu_custom_call.1} parent=1 // pred_check
      _
    $region7: #{tpu_custom_call.1} parent=1 // pred_check_branch
      %19 = sbr.rel (0) target = $region9
    $region8: #{tpu_custom_call.1} parent=1 // pred_region
      %20 = dma.done [#allocation3], 256
    $region9: #{tpu_custom_call.1} parent=1 // pred_fallthru
      _
    %v21 = vld [vmem:[#allocation2] sm:$0xff]
    %v22 = vld [vmem:[#allocation2 + $0x8] sm:$0xff]
    %v23 = vlaneseq
    %v24 = vand.u32 %v23, 127
    %v25 = vadd.s32 %v24, 128
    %v26 = vand.u32 %v24, 15
    %v27 = vand.u32 %v25, 15
    %v28 = vshrl.u32 %v24, 4
    %v29 = vshrl.u32 %v25, 4
    %v30 = vand.u32 %v28, 15
    %v31 = vand.u32 %v29, 15
    %32 = vrot.lane.b32.xlu0 %v21, 1
    %v33 = vpop.permute.xlu0 %32
    %34 = vrot.lane.b32.xlu0 %v22, 1
    %v35 = vpop.permute.xlu0 %34
    %vm36 = vcmp.lt.s32.totalorder %v24, 1
    %v37 = vsel %vm36, %v33, %v35
    %v38 = vsel %vm36, %v35, %v33
    %vm39 = vcmp.ge.s32.totalorder %v26, 1
    %vm40 = vcmp.ge.s32.totalorder %v27, 1
    %v41 = vsel %vm39, 1, 0
    %v42 = vsel %vm40, 1, 0
    %vm43 = vcmp.eq.s32.totalorder %v41, 1
    %vm44 = vcmp.eq.s32.totalorder %v42, 1
    %v45 = vsel %vm43, %v38, 0.0
    %v46 = vsel %vm44, %v37, 0.0
    %v47 = vadd.f32 %v21, %v45
    %v48 = vadd.f32 %v22, %v46
    %49 = vrot.lane.b32.xlu0 %v21, 127
    %v50 = vpop.permute.xlu0 %49
    %51 = vrot.lane.b32.xlu0 %v22, 127
    %v52 = vpop.permute.xlu0 %51
    %vm53 = vcmp.lt.s32.totalorder %v24, 127
    %v54 = vsel %vm53, %v50, %v52
    %v55 = vsel %vm53, %v52, %v50
    %vm56 = vcmp.lt.s32.totalorder %v26, 15
    %vm57 = vcmp.lt.s32.totalorder %v27, 15
    %v58 = vsel %vm56, 1, 0
    %v59 = vsel %vm57, 1, 0
    %vm60 = vcmp.eq.s32.totalorder %v58, 1
    %vm61 = vcmp.eq.s32.totalorder %v59, 1
    %v62 = vsel %vm60, %v54, 0.0
    %v63 = vsel %vm61, %v55, 0.0
    %v64 = vadd.f32 %v47, %v62
    %v65 = vadd.f32 %v48, %v63
    %66 = vrot.lane.b32.xlu0 %v64, 16
    %v67 = vpop.permute.xlu0 %66
    %68 = vrot.lane.b32.xlu0 %v65, 16
    %v69 = vpop.permute.xlu0 %68
    %vm70 = vcmp.lt.s32.totalorder %v24, 16
    %v71 = vsel %vm70, %v67, %v69
    %v72 = vsel %vm70, %v69, %v67
    %vm73 = vcmp.ge.s32.totalorder %v30, 1
    %vm74 = vcmp.ge.s32.totalorder %v31, 1
    %v75 = vsel %vm73, 1, 0
    %v76 = vsel %vm74, 1, 0
    %vm77 = vcmp.eq.s32.totalorder %v75, 1
    %vm78 = vcmp.eq.s32.totalorder %v76, 1
    %v79 = vsel %vm77, %v72, 0.0
    %v80 = vsel %vm78, %v71, 0.0
    %v81 = vadd.f32 %v64, %v79
    %v82 = vadd.f32 %v65, %v80
    %83 = vrot.lane.b32.xlu0 %v64, 112
    %v84 = vpop.permute.xlu0 %83
    %85 = vrot.lane.b32.xlu0 %v65, 112
    %v86 = vpop.permute.xlu0 %85
    %vm87 = vcmp.lt.s32.totalorder %v24, 112
    %v88 = vsel %vm87, %v84, %v86
    %v89 = vsel %vm87, %v86, %v84
    %vm90 = vcmp.lt.s32.totalorder %v30, 15
    %vm91 = vcmp.lt.s32.totalorder %v31, 15
    %v92 = vsel %vm90, 1, 0
    %v93 = vsel %vm91, 1, 0
    %vm94 = vcmp.eq.s32.totalorder %v92, 1
    %vm95 = vcmp.eq.s32.totalorder %v93, 1
    %v96 = vsel %vm94, %v88, 0.0
    %v97 = vsel %vm95, %v89, 0.0
    %v98 = vadd.f32 %v81, %v96
    %v99 = vadd.f32 %v82, %v97
    %100 = vst [vmem:[#allocation5] sm:$0xff] %v98
    %101 = vst [vmem:[#allocation5 + $0x8] sm:$0xff] %v99
    // Predicated region
    $region10: #{tpu_custom_call.1} parent=1 // pred_check
      _
    $region11: #{tpu_custom_call.1} parent=1 // pred_check_branch
      %103 = sbr.rel (0) target = $region13
    $region12: #{tpu_custom_call.1} parent=1 // pred_region
      %s105 = ssub.s32 256, 256
      %106 = vsyncadd [#allocation4], %s105
      %s108 = sshll.u32 [#allocation5], 4
      %s109 = int_to_ptr.vmem [resolvable:$true] %s108
      %111 = dma.vmem_to_hbm [thread:$0]  %s109, 256, %s1, [#allocation4]
    $region13: #{tpu_custom_call.1} parent=1 // pred_fallthru
      _
    // Predicated region
    $region14: #{tpu_custom_call.1} parent=1 // pred_check
      _
    $region15: #{tpu_custom_call.1} parent=1 // pred_check_branch
      %113 = sbr.rel (0) target = $region17
    $region16: #{tpu_custom_call.1} parent=1 // pred_region
      %114 = dma.done [#allocation4], 256
    $region17: #{tpu_custom_call.1} parent=1 // pred_fallthru
      _
    %115 = vsyncpa [#allocation3], 1
    %116 = vsyncpa [#allocation4], 1

</llo_original>
